<compile_context>
chip_gen: v7x
topology: tpu7x:2x2x1
jax: 0.10.0
libtpu: 0.0.40
codegen_flags: <defaults>
</compile_context>

<pallas_src>
import jax
import jax.numpy as jnp
from jax.experimental import pallas as pl
from jax.experimental.pallas import tpu as pltpu


def _biasfree_ln_kernel(x_ref, w_ref, o_ref):
    # x_ref/o_ref: (C, TN) tile on the tiled path, (B, C, HW) on the tiny path.
    # Channels sit on the sublane (second-to-last) axis, spatial on lanes.
    # w_ref: (C, 1) per-channel scale, broadcasts along lanes (and batch).
    x = x_ref[...].astype(jnp.float32)
    w = w_ref[...].astype(jnp.float32)
    c = x.shape[-2]
    inv_c = 1.0 / c
    # Two-pass variance (robust vs. E[x^2]-E[x]^2 cancellation; the tile is
    # resident in VMEM so the second pass is free for this HBM-bound kernel).
    mu = jnp.sum(x, axis=-2, keepdims=True) * inv_c
    d = x - mu
    var = jnp.sum(d * d, axis=-2, keepdims=True) * inv_c
    inv = jax.lax.rsqrt(var + 1e-5)
    # Bias-free LN: x itself (not x - mu) is scaled by rsqrt(var + eps) * w.
    o_ref[...] = (x * inv * w).astype(o_ref.dtype)


def _cdiv(a, b):
    return -(-a // b)


def _pick_tile(hw, c, b, itemsize, budget_bytes=8 << 20):
    """Lane tile (multiple of 128) and a matching VMEM limit for the tiled path.

    Budget is conservative so it fits v5e's 16 MiB scoped-VMEM default and
    v7x's 64 MiB physical VMEM, including the f32 intermediates.
    """
    hw128 = _cdiv(hw, 128) * 128

    def footprint(tn):
        pipeline = 4 * c * tn * itemsize   # 2 input + 2 output pipeline buffers
        temps = 3 * c * tn * 4             # live f32: upcast x, (x - mu), scaled out
        return pipeline + temps

    tn = min(2048, hw128)
    while tn > 128 and footprint(tn) > budget_bytes:
        tn -= 128
    tn = max(tn, 128)

    # v7x has 2 TensorCores per chip; keep >= 2 parallel grid steps when b == 1
    # so this mem-bound kernel uses both cores' DMA bandwidth.
    if b == 1 and hw128 >= 256:
        while tn > 128 and _cdiv(hw, tn) < 2:
            tn = max(128, _cdiv(tn // 2, 128) * 128)

    vmem_limit = int(min(max(2 * footprint(tn), 4 << 20), 64 << 20))
    return tn, vmem_limit


def layernorm_nchw(x_nchw, weight):
    """Equivalent of LayerNorm(dim).forward(x) for x in NCHW (bias-free LN)."""
    b, c, h, w = x_nchw.shape
    hw = h * w
    x3d = x_nchw.reshape(b, c, hw)         # contiguous reshape: no transpose pass
    w2d = weight.reshape(c, 1)
    itemsize = jnp.dtype(x_nchw.dtype).itemsize
    total_bytes = b * c * hw * itemsize

    if total_bytes <= (1 << 20):
        # Tiny-input fast path: one grid step -> one fixed launch overhead.
        out3d = pl.pallas_call(
            _biasfree_ln_kernel,
            out_shape=jax.ShapeDtypeStruct((b, c, hw), x_nchw.dtype),
            grid=(1,),
            in_specs=[
                pl.BlockSpec((b, c, hw), lambda i: (0, 0, 0)),
                pl.BlockSpec((c, 1), lambda i: (0, 0)),
            ],
            out_specs=pl.BlockSpec((b, c, hw), lambda i: (0, 0, 0)),
        )(x3d, w2d)
        return out3d.reshape(b, c, h, w)

    tn, vmem_limit = _pick_tile(hw, c, b, itemsize)
    grid = (b, _cdiv(hw, tn))              # ragged last block padded by Pallas;
                                           # safe: reduction is lane-local and
                                           # padded-lane stores are clipped.
    out3d = pl.pallas_call(
        _biasfree_ln_kernel,
        out_shape=jax.ShapeDtypeStruct((b, c, hw), x_nchw.dtype),
        grid=grid,
        in_specs=[
            pl.BlockSpec((pl.Squeezed(), c, tn), lambda i, j: (i, 0, j)),
            pl.BlockSpec((c, 1), lambda i, j: (0, 0)),
        ],
        out_specs=pl.BlockSpec((pl.Squeezed(), c, tn), lambda i, j: (i, 0, j)),
        compiler_params=pltpu.CompilerParams(
            dimension_semantics=("parallel", "parallel"),
            vmem_limit_bytes=vmem_limit),
    )(x3d, w2d)
    return out3d.reshape(b, c, h, w)


# TODO(synk): TransformerBlock1's other submodules (TransformerBlockShort,
# ChannelInteraction, SpatialInteraction, LayerNorm2) are not defined in the
# provided spec, so only the shared bias-free LayerNorm primitive is
# implemented as a Pallas kernel here.
# TODO(synk): largest remaining win is fusing this LN with the downstream 1x1
# projection (qkv_conv / project_in) in one pallas_call so the normalized
# (C, TN) tile feeds jnp.dot on the MXU without an HBM round-trip.


if __name__ == "__main__":
    key = jax.random.PRNGKey(0)
    k1, k2, k3, k4 = jax.random.split(key, 4)

    def reference(x, weight):
        b, c, h, w = x.shape
        xr = jnp.transpose(x, (0, 2, 3, 1)).reshape(b, h * w, c)
        var = jnp.var(xr, axis=-1, keepdims=True)
        y = xr / jnp.sqrt(var + 1e-5) * weight
        return jnp.transpose(y.reshape(b, h, w, c), (0, 3, 1, 2))

    # Case 1: small feature map (batch=2, dim=32, 16x16) -> tiny fast path.
    b, c, h, w = 2, 32, 16, 16
    x1 = jax.random.normal(k1, (b, c, h, w), dtype=jnp.float32) + 3.0
    w1 = 1.0 + 0.05 * jax.random.normal(k2, (c,), dtype=jnp.float32)
    ref1 = jax.block_until_ready(reference(x1, w1))
    out1 = jax.block_until_ready(layernorm_nchw(x1, w1))
    assert out1.shape == x1.shape and out1.dtype == x1.dtype
    assert jnp.allclose(out1, ref1, atol=2e-5, rtol=2e-5)

    # Case 2: exercises the tiled path with a ragged last lane-block
    # (hw = 4900, not a multiple of 128; 3 spatial tiles of 2048).
    b, c, h, w = 2, 48, 70, 70
    x2 = jax.random.normal(k3, (b, c, h, w), dtype=jnp.float32) + 3.0
    w2 = 1.0 + 0.05 * jax.random.normal(k4, (c,), dtype=jnp.float32)
    ref2 = jax.block_until_ready(reference(x2, w2))
    out2 = jax.block_until_ready(layernorm_nchw(x2, w2))
    assert out2.shape == x2.shape and out2.dtype == x2.dtype
    assert jnp.allclose(out2, ref2, atol=2e-5, rtol=2e-5)

    print("KERNEL_OK")
</pallas_src>

<mosaic_0001>
module attributes {stable_mosaic.version = 11 : i64} {
  func.func @_biasfree_ln_kernel(%arg0: i32, %arg1: memref<2x32x256xf32, #tpu.memory_space<vmem>>, %arg2: memref<32x1xf32, #tpu.memory_space<vmem>>, %arg3: memref<2x32x256xf32, #tpu.memory_space<vmem>>) attributes {dimension_semantics = [#tpu.dimension_semantics<arbitrary>], iteration_bounds = array<i64: 1>, scalar_prefetch = 0 : i64, scratch_operands = 0 : i64, tpu.core_type = #tpu.core_type<tc>, window_params = [{pipeline_mode = #tpu.pipeline_mode<synchronous>, transform_indices = @transform_0, window_bounds = array<i64: 2, 32, 256>}, {pipeline_mode = #tpu.pipeline_mode<synchronous>, transform_indices = @transform_1, window_bounds = array<i64: 32, 1>}, {pipeline_mode = #tpu.pipeline_mode<synchronous>, transform_indices = @transform_2, window_bounds = array<i64: 2, 32, 256>}]} {
    %c0 = arith.constant 0 : index
    %c0_0 = arith.constant 0 : index
    %c0_1 = arith.constant 0 : index
    %0 = vector.load %arg1[%c0, %c0_0, %c0_1] : memref<2x32x256xf32, #tpu.memory_space<vmem>>, vector<2x32x256xf32>
    %c0_2 = arith.constant 0 : index
    %c0_3 = arith.constant 0 : index
    %1 = vector.load %arg2[%c0_2, %c0_3] : memref<32x1xf32, #tpu.memory_space<vmem>>, vector<32x1xf32>
    %cst = arith.constant dense<0.000000e+00> : vector<2x256xf32>
    %2 = vector.multi_reduction <add>, %0, %cst [1] : vector<2x32x256xf32> to vector<2x256xf32>
    %3 = vector.shape_cast %2 : vector<2x256xf32> to vector<2x1x256xf32>
    %cst_4 = arith.constant 3.125000e-02 : f32
    %4 = vector.broadcast %cst_4 : f32 to vector<2x1x256xf32>
    %5 = arith.mulf %3, %4 : vector<2x1x256xf32>
    %6 = vector.broadcast %5 : vector<2x1x256xf32> to vector<2x32x256xf32>
    %7 = arith.subf %0, %6 : vector<2x32x256xf32>
    %8 = arith.mulf %7, %7 : vector<2x32x256xf32>
    %cst_5 = arith.constant dense<0.000000e+00> : vector<2x256xf32>
    %9 = vector.multi_reduction <add>, %8, %cst_5 [1] : vector<2x32x256xf32> to vector<2x256xf32>
    %10 = vector.shape_cast %9 : vector<2x256xf32> to vector<2x1x256xf32>
    %cst_6 = arith.constant 3.125000e-02 : f32
    %11 = vector.broadcast %cst_6 : f32 to vector<2x1x256xf32>
    %12 = arith.mulf %10, %11 : vector<2x1x256xf32>
    %cst_7 = arith.constant 9.99999974E-6 : f32
    %13 = vector.broadcast %cst_7 : f32 to vector<2x1x256xf32>
    %14 = arith.addf %12, %13 : vector<2x1x256xf32>
    %15 = math.rsqrt %14 : vector<2x1x256xf32>
    %16 = vector.broadcast %15 : vector<2x1x256xf32> to vector<2x32x256xf32>
    %17 = arith.mulf %0, %16 : vector<2x32x256xf32>
    %18 = vector.shape_cast %1 : vector<32x1xf32> to vector<1x32x1xf32>
    %19 = vector.broadcast %18 : vector<1x32x1xf32> to vector<2x32x256xf32>
    %20 = arith.mulf %17, %19 : vector<2x32x256xf32>
    %c0_8 = arith.constant 0 : index
    %c0_9 = arith.constant 0 : index
    %c0_10 = arith.constant 0 : index
    %21 = vector.load %arg3[%c0_8, %c0_9, %c0_10] : memref<2x32x256xf32, #tpu.memory_space<vmem>>, vector<2x32x256xf32>
    tpu.vector_store %arg3[%c0_8, %c0_9, %c0_10], %20 {strides = array<i32>} : memref<2x32x256xf32, #tpu.memory_space<vmem>>, vector<2x32x256xf32>,
    return
  }
  func.func @transform_0(%arg0: i32) -> (i32, i32, i32) {
    %c0_i32 = arith.constant 0 : i32
    %c0_i32_0 = arith.constant 0 : i32
    %c0_i32_1 = arith.constant 0 : i32
    %c0_i32_2 = arith.constant 0 : i32
    return %c0_i32, %c0_i32_0, %c0_i32_1 : i32, i32, i32
  }
  func.func @transform_1(%arg0: i32) -> (i32, i32) {
    %c0_i32 = arith.constant 0 : i32
    %c0_i32_0 = arith.constant 0 : i32
    %c0_i32_1 = arith.constant 0 : i32
    return %c0_i32, %c0_i32_0 : i32, i32
  }
  func.func @transform_2(%arg0: i32) -> (i32, i32, i32) {
    %c0_i32 = arith.constant 0 : i32
    %c0_i32_0 = arith.constant 0 : i32
    %c0_i32_1 = arith.constant 0 : i32
    %c0_i32_2 = arith.constant 0 : i32
    return %c0_i32, %c0_i32_0, %c0_i32_1 : i32, i32, i32
  }
}

</mosaic_0001>

<llo_original>
// kernel: tpu_custom_call.1
$region0: #{tpu_custom_call.1}
  #allocation0 [shape = 'u32[]', space=smem, size = 0x4, offset = 0x4, fixed_abs, tag = 'smem constant byte address 0x4 - core index']
  #allocation1 [shape = 'u32[144,128]{1,0:T(1,128)}', space=vmem, size = 0x12000, scoped, tag = 'internal scratch']
  %s0 = inlined_call_operand.hbm [shape: f32[2,32,256], index: 0, kind: input, shape index: {}]
  %s1 = inlined_call_operand.vmem [shape: f32[32,1], index: 1, kind: input, shape index: {}]
  %s2 = inlined_call_operand.hbm [shape: f32[2,32,256], index: 2, kind: output, shape index: {}]
  %s3 = sld [smem:[#allocation0]]
  $region22: #{tpu_custom_call.1} parent=0
    _
  %s5 = ssub.s32 1, %s3
  %s6 = scalar_select 0, %s5, %s3
  $region1: #{tpu_custom_call.1} parent=0
    #allocation2 [shape = 'u8[65536]{0}', space=vmem, size = 0x10000, scoped, tag = 'input window, operand 0, single buffered']
    #allocation3 [shape = 's32[1]{0}', space=sflag, size = 0x4, scoped, tag = 'scoped memory for tpu_custom_call.1']
    #allocation4 [shape = 's32[1]{0}', space=sflag, size = 0x4, scoped, tag = 'scoped memory for tpu_custom_call.1']
    #allocation5 [shape = 'u8[65536]{0}', space=vmem, size = 0x10000, scoped, tag = 'output window, operand 0, single buffered']
    %7 = vsyncpa [#allocation3], 0
    %8 = vsyncpa [#allocation4], 0
    // Predicated region
    $region2: #{tpu_custom_call.1} parent=1 // pred_check
      _
    $region3: #{tpu_custom_call.1} parent=1 // pred_check_branch
      %10 = sbr.rel (0) target = $region5
    $region4: #{tpu_custom_call.1} parent=1 // pred_region
      %s12 = ssub.s32 2048, 2048
      %13 = vsyncadd [#allocation3], %s12
      %s14 = sshll.u32 [#allocation2], 4
      %s15 = int_to_ptr.vmem [resolvable:$true] %s14
      %20 = dma.hbm_to_vmem [thread:$0]  %s0, 2048, %s15, [#allocation3], 256, 256, 16
    $region5: #{tpu_custom_call.1} parent=1 // pred_fallthru
      _
    // Predicated region
    $region6: #{tpu_custom_call.1} parent=1 // pred_check
      _
    $region7: #{tpu_custom_call.1} parent=1 // pred_check_branch
      %22 = sbr.rel (0) target = $region9
    $region8: #{tpu_custom_call.1} parent=1 // pred_region
      _
    $region9: #{tpu_custom_call.1} parent=1 // pred_fallthru
      _
    // Predicated region
    $region10: #{tpu_custom_call.1} parent=1 // pred_check
      _
    $region11: #{tpu_custom_call.1} parent=1 // pred_check_branch
      %24 = sbr.rel (0) target = $region13
    $region12: #{tpu_custom_call.1} parent=1 // pred_region
      %25 = dma.done [#allocation3], 2048
    $region13: #{tpu_custom_call.1} parent=1 // pred_fallthru
      _
    %v26 = vld [vmem:[#allocation2] sm:$0xff]
    %v27 = vld [vmem:[#allocation2 + $0x8] sm:$0xff]
    %v28 = vld [vmem:[#allocation2 + $0x10] sm:$0xff]
    %v29 = vld [vmem:[#allocation2 + $0x18] sm:$0xff]
    %v30 = vld [vmem:[#allocation2 + $0x20] sm:$0xff]
    %v31 = vld [vmem:[#allocation2 + $0x28] sm:$0xff]
    %v32 = vld [vmem:[#allocation2 + $0x30] sm:$0xff]
    %v33 = vld [vmem:[#allocation2 + $0x38] sm:$0xff]
    %v34 = vld [vmem:[#allocation2 + $0x40] sm:$0xff]
    %v35 = vld [vmem:[#allocation2 + $0x48] sm:$0xff]
    %v36 = vld [vmem:[#allocation2 + $0x50] sm:$0xff]
    %v37 = vld [vmem:[#allocation2 + $0x58] sm:$0xff]
    %v38 = vld [vmem:[#allocation2 + $0x60] sm:$0xff]
    %v39 = vld [vmem:[#allocation2 + $0x68] sm:$0xff]
    %v40 = vld [vmem:[#allocation2 + $0x70] sm:$0xff]
    %v41 = vld [vmem:[#allocation2 + $0x78] sm:$0xff]
    %v42 = vld [vmem:[%s1] sm:$0xff]
    %v43 = vld [vmem:[%s1 + $0x8] sm:$0xff]
    %v44 = vld [vmem:[%s1 + $0x10] sm:$0xff]
    %v45 = vld [vmem:[%s1 + $0x18] sm:$0xff]
    %v46 = vadd.f32 %v26, %v28
    %v47 = vadd.f32 %v46, %v30
    %v48 = vadd.f32 %v47, %v32
    %v49 = vrot.slane %v48, 4
    %v50 = vadd.f32 %v48, %v49
    %v51 = vrot.slane %v50, 2
    %v52 = vadd.f32 %v50, %v51
    %v53 = vrot.slane %v52, 1
    %v54 = vadd.f32 %v52, %v53
    %v55 = vadd.f32 %v27, %v29
    %v56 = vadd.f32 %v55, %v31
    %v57 = vadd.f32 %v56, %v33
    %v58 = vrot.slane %v57, 4
    %v59 = vadd.f32 %v57, %v58
    %v60 = vrot.slane %v59, 2
    %v61 = vadd.f32 %v59, %v60
    %v62 = vrot.slane %v61, 1
    %v63 = vadd.f32 %v61, %v62
    %v64 = vadd.f32 %v34, %v36
    %v65 = vadd.f32 %v64, %v38
    %v66 = vadd.f32 %v65, %v40
    %v67 = vrot.slane %v66, 4
    %v68 = vadd.f32 %v66, %v67
    %v69 = vrot.slane %v68, 2
    %v70 = vadd.f32 %v68, %v69
    %v71 = vrot.slane %v70, 1
    %v72 = vadd.f32 %v70, %v71
    %v73 = vadd.f32 %v35, %v37
    %v74 = vadd.f32 %v73, %v39
    %v75 = vadd.f32 %v74, %v41
    %v76 = vrot.slane %v75, 4
    %v77 = vadd.f32 %v75, %v76
    %v78 = vrot.slane %v77, 2
    %v79 = vadd.f32 %v77, %v78
    %v80 = vrot.slane %v79, 1
    %v81 = vadd.f32 %v79, %v80
    %v82 = vmul.f32 %v54, 0.03125
    %v83 = vmul.f32 %v63, 0.03125
    %v84 = vmul.f32 %v72, 0.03125
    %v85 = vmul.f32 %v81, 0.03125
    %v86 = vsub.f32 %v26, %v82
    %v87 = vsub.f32 %v27, %v83
    %v88 = vsub.f32 %v28, %v82
    %v89 = vsub.f32 %v29, %v83
    %v90 = vsub.f32 %v30, %v82
    %v91 = vsub.f32 %v31, %v83
    %v92 = vsub.f32 %v32, %v82
    %v93 = vsub.f32 %v33, %v83
    %v94 = vsub.f32 %v34, %v84
    %v95 = vsub.f32 %v35, %v85
    %v96 = vsub.f32 %v36, %v84
    %v97 = vsub.f32 %v37, %v85
    %v98 = vsub.f32 %v38, %v84
    %v99 = vsub.f32 %v39, %v85
    %v100 = vsub.f32 %v40, %v84
    %v101 = vsub.f32 %v41, %v85
    %v102 = vmul.f32 %v86, %v86
    %v103 = vmul.f32 %v87, %v87
    %v104 = vmul.f32 %v88, %v88
    %v105 = vmul.f32 %v89, %v89
    %v106 = vmul.f32 %v90, %v90
    %v107 = vmul.f32 %v91, %v91
    %v108 = vmul.f32 %v92, %v92
    %v109 = vmul.f32 %v93, %v93
    %v110 = vmul.f32 %v94, %v94
    %v111 = vmul.f32 %v95, %v95
    %v112 = vmul.f32 %v96, %v96
    %v113 = vmul.f32 %v97, %v97
    %v114 = vmul.f32 %v98, %v98
    %v115 = vmul.f32 %v99, %v99
    %v116 = vmul.f32 %v100, %v100
    %v117 = vmul.f32 %v101, %v101
    %v118 = vadd.f32 %v102, %v104
    %v119 = vadd.f32 %v118, %v106
    %v120 = vadd.f32 %v119, %v108
    %v121 = vrot.slane %v120, 4
    %v122 = vadd.f32 %v120, %v121
    %v123 = vrot.slane %v122, 2
    %v124 = vadd.f32 %v122, %v123
    %v125 = vrot.slane %v124, 1
    %v126 = vadd.f32 %v124, %v125
    %v127 = vadd.f32 %v103, %v105
    %v128 = vadd.f32 %v127, %v107
    %v129 = vadd.f32 %v128, %v109
    %v130 = vrot.slane %v129, 4
    %v131 = vadd.f32 %v129, %v130
    %v132 = vrot.slane %v131, 2
    %v133 = vadd.f32 %v131, %v132
    %v134 = vrot.slane %v133, 1
    %v135 = vadd.f32 %v133, %v134
    %v136 = vadd.f32 %v110, %v112
    %v137 = vadd.f32 %v136, %v114
    %v138 = vadd.f32 %v137, %v116
    %v139 = vrot.slane %v138, 4
    %v140 = vadd.f32 %v138, %v139
    %v141 = vrot.slane %v140, 2
    %v142 = vadd.f32 %v140, %v141
    %v143 = vrot.slane %v142, 1
    %v144 = vadd.f32 %v142, %v143
    %v145 = vadd.f32 %v111, %v113
    %v146 = vadd.f32 %v145, %v115
    %v147 = vadd.f32 %v146, %v117
    %v148 = vrot.slane %v147, 4
    %v149 = vadd.f32 %v147, %v148
    %v150 = vrot.slane %v149, 2
    %v151 = vadd.f32 %v149, %v150
    %v152 = vrot.slane %v151, 1
    %v153 = vadd.f32 %v151, %v152
    %v154 = vmul.f32 %v126, 0.03125
    %v155 = vmul.f32 %v135, 0.03125
    %v156 = vmul.f32 %v144, 0.03125
    %v157 = vmul.f32 %v153, 0.03125
    %v158 = vadd.f32 %v154, 1e-05
    %v159 = vadd.f32 %v155, 1e-05
    %v160 = vadd.f32 %v156, 1e-05
    %v161 = vadd.f32 %v157, 1e-05
    %v162 = vrsqrt.pop %v158
    %v163 = vrsqrt.pop %v159
    %v164 = vrsqrt.pop %v160
    %v165 = vrsqrt.pop %v161
    %v166 = vmul.f32 %v26, %v162
    %v167 = vmul.f32 %v27, %v163
    %v168 = vmul.f32 %v28, %v162
    %v169 = vmul.f32 %v29, %v163
    %v170 = vmul.f32 %v30, %v162
    %v171 = vmul.f32 %v31, %v163
    %v172 = vmul.f32 %v32, %v162
    %v173 = vmul.f32 %v33, %v163
    %v174 = vmul.f32 %v34, %v164
    %v175 = vmul.f32 %v35, %v165
    %v176 = vmul.f32 %v36, %v164
    %v177 = vmul.f32 %v37, %v165
    %v178 = vmul.f32 %v38, %v164
    %v179 = vmul.f32 %v39, %v165
    %v180 = vmul.f32 %v40, %v164
    %v181 = vmul.f32 %v41, %v165
    %183 = vset.pattern.permute.xlu0 0
    %184 = vperm.xlu0 %183, %v42
    %v185 = vpop.permute.xlu0 %184
    %188 = vset.pattern.permute.xlu0 0
    %189 = vperm.xlu0 %188, %v43
    %v190 = vpop.permute.xlu0 %189
    %193 = vset.pattern.permute.xlu0 0
    %194 = vperm.xlu0 %193, %v44
    %v195 = vpop.permute.xlu0 %194
    %198 = vset.pattern.permute.xlu0 0
    %199 = vperm.xlu0 %198, %v45
    %v200 = vpop.permute.xlu0 %199
    %v202 = vmul.f32 %v166, %v185
    %v203 = vmul.f32 %v167, %v185
    %v204 = vmul.f32 %v168, %v190
    %v205 = vmul.f32 %v169, %v190
    %v206 = vmul.f32 %v170, %v195
    %v207 = vmul.f32 %v171, %v195
    %v208 = vmul.f32 %v172, %v200
    %v209 = vmul.f32 %v173, %v200
    %v210 = vmul.f32 %v174, %v185
    %v211 = vmul.f32 %v175, %v185
    %v212 = vmul.f32 %v176, %v190
    %v213 = vmul.f32 %v177, %v190
    %v214 = vmul.f32 %v178, %v195
    %v215 = vmul.f32 %v179, %v195
    %v216 = vmul.f32 %v180, %v200
    %v217 = vmul.f32 %v181, %v200
    %218 = vst [vmem:[#allocation5] sm:$0xff] %v202
    %219 = vst [vmem:[#allocation5 + $0x8] sm:$0xff] %v203
    %220 = vst [vmem:[#allocation5 + $0x10] sm:$0xff] %v204
    %221 = vst [vmem:[#allocation5 + $0x18] sm:$0xff] %v205
    %222 = vst [vmem:[#allocation5 + $0x20] sm:$0xff] %v206
    %223 = vst [vmem:[#allocation5 + $0x28] sm:$0xff] %v207
    %224 = vst [vmem:[#allocation5 + $0x30] sm:$0xff] %v208
    %225 = vst [vmem:[#allocation5 + $0x38] sm:$0xff] %v209
    %226 = vst [vmem:[#allocation5 + $0x40] sm:$0xff] %v210
    %227 = vst [vmem:[#allocation5 + $0x48] sm:$0xff] %v211
    %228 = vst [vmem:[#allocation5 + $0x50] sm:$0xff] %v212
    %229 = vst [vmem:[#allocation5 + $0x58] sm:$0xff] %v213
    %230 = vst [vmem:[#allocation5 + $0x60] sm:$0xff] %v214
    %231 = vst [vmem:[#allocation5 + $0x68] sm:$0xff] %v215
    %232 = vst [vmem:[#allocation5 + $0x70] sm:$0xff] %v216
    %233 = vst [vmem:[#allocation5 + $0x78] sm:$0xff] %v217
    // Predicated region
    $region14: #{tpu_custom_call.1} parent=1 // pred_check
      _
    $region15: #{tpu_custom_call.1} parent=1 // pred_check_branch
      %235 = sbr.rel (0) target = $region17
    $region16: #{tpu_custom_call.1} parent=1 // pred_region
      %s237 = ssub.s32 2048, 2048
      %238 = vsyncadd [#allocation4], %s237
      %s239 = sshll.u32 [#allocation5], 4
      %s240 = int_to_ptr.vmem [resolvable:$true] %s239
      %245 = dma.vmem_to_hbm [thread:$0]  %s240, 2048, %s2, [#allocation4], 256, 256, 16
    $region17: #{tpu_custom_call.1} parent=1 // pred_fallthru
      _
    // Predicated region
    $region18: #{tpu_custom_call.1} parent=1 // pred_check
      _
    $region19: #{tpu_custom_call.1} parent=1 // pred_check_branch
      %247 = sbr.rel (0) target = $region21
    $region20: #{tpu_custom_call.1} parent=1 // pred_region
      %248 = dma.done [#allocation4], 2048
    $region21: #{tpu_custom_call.1} parent=1 // pred_fallthru
      _
    %249 = vsyncpa [#allocation3], 1
    %250 = vsyncpa [#allocation4], 1

</llo_original>
